<compile_context>
chip_gen: v7x
topology: tpu7x:2x2x1
jax: 0.10.0
libtpu: 0.0.40
codegen_flags: <defaults>
</compile_context>

<pallas_src>
import numpy as np

import jax
import jax.numpy as jnp
from jax.experimental import pallas as pl
from jax.experimental.pallas import tpu as pltpu


def _round_up(n: int, m: int) -> int:
    return ((n + m - 1) // m) * m


def _vmem_budget():
    """Chip-gated (vmem_limit_bytes, max_tile_pix)."""
    try:
        info = pltpu.get_tpu_info()
        vmem = getattr(info, "vmem_capacity_bytes", None)
        if vmem is None:
            vmem = 64 << 20
    except Exception:  # pragma: no cover - off-TPU / API drift fallback
        vmem = 64 << 20
    if vmem >= (100 << 20):
        # v5e / v6e: 128 MiB physical VMEM -> roomy scoped limit, bigger tiles OK.
        return 64 << 20, 32768
    # v7x (or unknown): 64 MiB physical -> keep double-buffered output + f32
    # intermediates well under the ceiling.
    return 28 << 20, 16384


def _det_head_kernel(x_ref, w1t_ref, b1_ref, w2t_ref, b2_ref, o_ref):
    """Fused per-pixel detection head on a (channels, pixels) tile.

    x_ref : (C_in,  TP)  input pixels (native dtype; bf16 ideal, f32 accepted)
    w1t   : (HID,  C_in) first 1x1-conv weight, pre-transposed, bf16, resident
    b1    : (HID,  1)    first bias (f32), broadcast along the lane/pixel axis
    w2t   : (C_out, HID) second 1x1-conv weight, pre-transposed, bf16, resident
    b2    : (C_out, 1)   second bias (f32)
    o_ref : (C_out, TP)  output tile (lane-dense, bf16 store)
    """
    x = x_ref[...]                                                       # (C_in, TP)
    h = jnp.dot(w1t_ref[...], x, preferred_element_type=jnp.float32)    # (HID, TP) f32
    h = jnp.maximum(h + b1_ref[...], 0.0)                               # f32 epilogue (v5e-safe)
    h = h.astype(w2t_ref.dtype)                                         # bf16 into 2nd MXU pass
    o = jnp.dot(w2t_ref[...], h, preferred_element_type=jnp.float32)    # (C_out, TP) f32
    o_ref[...] = (o + b2_ref[...]).astype(o_ref.dtype)


def detection_head_pallas(x, w1t, b1, w2t, b2, *, tile_pix=16384,
                          out_dtype=jnp.bfloat16, pixel_core_parallel=False):
    """Fused 1x1-conv -> ReLU -> 1x1-conv head.

    x    : (B, C_in, P)   NCHW input flattened over the spatial dims.
    w1t  : (HID, C_in)    b1: (HID, 1)
    w2t  : (C_out, HID)   b2: (C_out, 1)
    out  : (B, C_out, P)  in `out_dtype` (bf16: dominant HBM write).
    """
    B, c_in, n_pix = x.shape
    hid = w1t.shape[0]
    c_out = w2t.shape[0]

    vmem_limit, max_tp = _vmem_budget()

    # Pixel tile: multiple of 128 (lane axis), capped by the chip budget and by
    # the pixel count.  Default 16384 -> exactly 25 steps on a 640x640 image.
    tp = min(int(tile_pix), max_tp)
    tp = _round_up(min(tp, _round_up(n_pix, 128)), 128)
    grid = (B, pl.cdiv(n_pix, tp))   # ragged tail handled by Pallas block masking

    pixel_sem = "parallel"
    if pixel_core_parallel:
        # v7x: explicitly shard the pixel-tile axis across the 2 TensorCores
        # (the batch axis is often size 1 and carries no parallelism).
        pixel_sem = pltpu.CORE_PARALLEL

    cost = pl.CostEstimate(
        flops=2 * B * n_pix * (c_in * hid + hid * c_out),
        transcendentals=0,
        bytes_accessed=(B * n_pix * c_in * x.dtype.itemsize
                        + B * n_pix * c_out * np.dtype(out_dtype).itemsize
                        + (hid * c_in + c_out * hid) * np.dtype(w1t.dtype).itemsize
                        + (hid + c_out) * 4),
    )

    return pl.pallas_call(
        _det_head_kernel,
        out_shape=jax.ShapeDtypeStruct((B, c_out, n_pix), out_dtype),
        grid_spec=pltpu.PrefetchScalarGridSpec(
            num_scalar_prefetch=0,
            grid=grid,
            in_specs=[
                # batch dim squeezed out of the kernel view; pixels tiled on lanes.
                pl.BlockSpec((None, c_in, tp), lambda b, p: (b, 0, p)),
                # weights / biases: constant index_map -> kept resident in VMEM.
                pl.BlockSpec((hid, c_in), lambda b, p: (0, 0)),
                pl.BlockSpec((hid, 1), lambda b, p: (0, 0)),
                pl.BlockSpec((c_out, hid), lambda b, p: (0, 0)),
                pl.BlockSpec((c_out, 1), lambda b, p: (0, 0)),
            ],
            out_specs=pl.BlockSpec((None, c_out, tp), lambda b, p: (b, 0, p)),
        ),
        compiler_params=pltpu.CompilerParams(
            dimension_semantics=("parallel", pixel_sem),
            vmem_limit_bytes=vmem_limit,
        ),
        cost_estimate=cost,
    )(x, w1t, b1, w2t, b2)


class UnifiedDetectionModelPallas:
    """JAX/Pallas realization of the UnifiedDetectionModel forward pass."""

    def __init__(self, config):
        self.config = config
        self.num_classes = config.get("num_classes", 80)
        self.input_size = config.get("input_size", 640)
        self.in_channels = config.get("in_channels", 3)
        self.hidden = config.get("hidden", 32)
        self.tile_pixels = config.get("tile_pixels", 16384)
        self.pixel_core_parallel = config.get("pixel_core_parallel", False)
        self.out_channels = self.num_classes + 5  # boxes(4) + objectness(1) + classes

        # Deterministic parameter init (synthetic, no checkpoint load).
        # Weights stored pre-transposed (pixels-on-lanes kernel layout) and in
        # bf16 so the MXU runs single-pass bf16 x bf16 with f32 accumulation.
        # Biases stay f32 (added to f32 accumulators in the epilogue).
        k = jax.random.PRNGKey(0)
        k1, k2, k3, k4 = jax.random.split(k, 4)
        c_in, hid, c_out = self.in_channels, self.hidden, self.out_channels
        self.w1_t = (jax.random.normal(k1, (hid, c_in), jnp.float32)
                     * (1.0 / jnp.sqrt(c_in))).astype(jnp.bfloat16)
        self.b1 = jax.random.normal(k2, (hid, 1), jnp.float32) * 0.01
        self.w2_t = (jax.random.normal(k3, (c_out, hid), jnp.float32)
                     * (1.0 / jnp.sqrt(hid))).astype(jnp.bfloat16)
        self.b2 = jax.random.normal(k4, (c_out, 1), jnp.float32) * 0.01

    def forward(self, x_nchw):
        """x_nchw: (B, C_in, H, W) float -> (B, num_classes+5, H, W) bfloat16."""
        B, C, H, W = x_nchw.shape
        assert C == self.in_channels
        # NCHW -> (B, C, H*W) is a free reshape (no transpose / no extra HBM pass).
        # The kernel accepts f32 or bf16 input directly; no wrapper-side cast
        # (that would be a separate full-HBM XLA pass).  Feed bf16 activations
        # from upstream for the single-pass MXU path and halved input reads.
        x = x_nchw.reshape(B, C, H * W)
        out = detection_head_pallas(
            x, self.w1_t, self.b1, self.w2_t, self.b2,
            tile_pix=self.tile_pixels, out_dtype=jnp.bfloat16,
            pixel_core_parallel=self.pixel_core_parallel)
        # (B, C_out, H*W) is already channel-major -> free reshape back to NCHW.
        return out.reshape(B, self.out_channels, H, W)

    def __call__(self, x):
        return self.forward(x)


def _reference_forward(model, x_nchw):
    """Pure-JAX reference for correctness checking (f32 math, bf16 master weights)."""
    B, C, H, W = x_nchw.shape
    x = x_nchw.reshape(B, C, H * W).astype(jnp.float32)
    w1 = model.w1_t.astype(jnp.float32)
    w2 = model.w2_t.astype(jnp.float32)
    h = jnp.maximum(jnp.einsum("hc,bcp->bhp", w1, x) + model.b1[None], 0.0)
    o = jnp.einsum("oh,bhp->bop", w2, h) + model.b2[None]
    return o.reshape(B, model.out_channels, H, W)


if __name__ == "__main__":
    config = {
        "num_classes": 8,     # small synthetic config -> out_channels = 13
        "input_size": 16,
        "in_channels": 4,
        "hidden": 32,
        "tile_pixels": 16384,  # default; capped to the pixel count for tiny inputs
        "device": "tpu",
    }
    model = UnifiedDetectionModelPallas(config)

    # Test 1: f32 NCHW input, pixel count a clean multiple of 128, single tile.
    x1 = jax.random.normal(jax.random.PRNGKey(0), (2, 4, 16, 16), jnp.float32)
    out1 = jax.block_until_ready(model(x1))
    ref1 = _reference_forward(model, x1)
    assert out1.shape == (2, config["num_classes"] + 5, 16, 16), out1.shape
    assert out1.dtype == jnp.bfloat16, out1.dtype
    assert jnp.allclose(out1.astype(jnp.float32), ref1, atol=5e-2, rtol=5e-2), \
        "mismatch vs reference (test 1)"

    # Test 2: bf16 input + ragged pixel tiling (H*W not a multiple of the tile).
    model.tile_pixels = 256
    x2 = jax.random.normal(jax.random.PRNGKey(1), (2, 4, 16, 24),
                           jnp.float32).astype(jnp.bfloat16)
    out2 = jax.block_until_ready(model(x2))
    ref2 = _reference_forward(model, x2)   # reference also sees the bf16-rounded input
    assert out2.shape == (2, config["num_classes"] + 5, 16, 24), out2.shape
    assert jnp.allclose(out2.astype(jnp.float32), ref2, atol=5e-2, rtol=5e-2), \
        "mismatch vs reference (test 2)"

    print("KERNEL_OK")
</pallas_src>

<mosaic_0001>
module attributes {stable_mosaic.version = 11 : i64} {
  func.func @_det_head_kernel(%arg0: i32, %arg1: i32, %arg2: memref<1x4x256xf32, #tpu.memory_space<vmem>>, %arg3: memref<32x4xbf16, #tpu.memory_space<vmem>>, %arg4: memref<32x1xf32, #tpu.memory_space<vmem>>, %arg5: memref<13x32xbf16, #tpu.memory_space<vmem>>, %arg6: memref<13x1xf32, #tpu.memory_space<vmem>>, %arg7: memref<1x13x256xbf16, #tpu.memory_space<vmem>>) attributes {dimension_semantics = [#tpu.dimension_semantics<parallel>, #tpu.dimension_semantics<parallel>], iteration_bounds = array<i64: 2, 1>, scalar_prefetch = 0 : i64, scratch_operands = 0 : i64, tpu.core_type = #tpu.core_type<tc>, window_params = [{transform_indices = @transform_0, window_bounds = array<i64: 1, 4, 256>}, {pipeline_mode = #tpu.pipeline_mode<synchronous>, transform_indices = @transform_1, window_bounds = array<i64: 32, 4>}, {pipeline_mode = #tpu.pipeline_mode<synchronous>, transform_indices = @transform_2, window_bounds = array<i64: 32, 1>}, {pipeline_mode = #tpu.pipeline_mode<synchronous>, transform_indices = @transform_3, window_bounds = array<i64: 13, 32>}, {pipeline_mode = #tpu.pipeline_mode<synchronous>, transform_indices = @transform_4, window_bounds = array<i64: 13, 1>}, {transform_indices = @transform_5, window_bounds = array<i64: 1, 13, 256>}]} {
    %c0 = arith.constant 0 : index
    %c0_0 = arith.constant 0 : index
    %c0_1 = arith.constant 0 : index
    %0 = vector.load %arg2[%c0, %c0_0, %c0_1] : memref<1x4x256xf32, #tpu.memory_space<vmem>>, vector<1x4x256xf32>
    %1 = vector.shape_cast %0 : vector<1x4x256xf32> to vector<4x256xf32>
    %c0_2 = arith.constant 0 : index
    %c0_3 = arith.constant 0 : index
    %2 = vector.load %arg3[%c0_2, %c0_3] : memref<32x4xbf16, #tpu.memory_space<vmem>>, vector<32x4xbf16>
    %cst = arith.constant dense<0.000000e+00> : vector<32x256xf32>
    %3 = tpu.matmul %2, %1, %cst {dimension_numbers = #tpu.dot_dimension_numbers<[1], [0], [0], [1], [0, 0, 1, 1], [], []>} : vector<32x4xbf16>, vector<4x256xf32>, vector<32x256xf32> -> vector<32x256xf32>
    %c0_4 = arith.constant 0 : index
    %c0_5 = arith.constant 0 : index
    %4 = vector.load %arg4[%c0_4, %c0_5] : memref<32x1xf32, #tpu.memory_space<vmem>>, vector<32x1xf32>
    %5 = vector.broadcast %4 : vector<32x1xf32> to vector<32x256xf32>
    %6 = arith.addf %3, %5 : vector<32x256xf32>
    %cst_6 = arith.constant 0.000000e+00 : f32
    %7 = vector.broadcast %cst_6 : f32 to vector<32x256xf32>
    %8 = arith.maximumf %6, %7 : vector<32x256xf32>
    %9 = arith.truncf %8 : vector<32x256xf32> to vector<32x256xbf16>
    %c0_7 = arith.constant 0 : index
    %c0_8 = arith.constant 0 : index
    %10 = vector.load %arg5[%c0_7, %c0_8] : memref<13x32xbf16, #tpu.memory_space<vmem>>, vector<13x32xbf16>
    %cst_9 = arith.constant dense<0.000000e+00> : vector<13x256xf32>
    %11 = tpu.matmul %10, %9, %cst_9 {dimension_numbers = #tpu.dot_dimension_numbers<[1], [0], [0], [1], [0, 0, 1, 1], [], []>} : vector<13x32xbf16>, vector<32x256xbf16>, vector<13x256xf32> -> vector<13x256xf32>
    %c0_10 = arith.constant 0 : index
    %c0_11 = arith.constant 0 : index
    %12 = vector.load %arg6[%c0_10, %c0_11] : memref<13x1xf32, #tpu.memory_space<vmem>>, vector<13x1xf32>
    %13 = vector.broadcast %12 : vector<13x1xf32> to vector<13x256xf32>
    %14 = arith.addf %11, %13 : vector<13x256xf32>
    %15 = arith.truncf %14 : vector<13x256xf32> to vector<13x256xbf16>
    %c0_12 = arith.constant 0 : index
    %c0_13 = arith.constant 0 : index
    %c0_14 = arith.constant 0 : index
    %16 = vector.load %arg7[%c0_12, %c0_13, %c0_14] : memref<1x13x256xbf16, #tpu.memory_space<vmem>>, vector<1x13x256xbf16>
    %17 = vector.shape_cast %16 : vector<1x13x256xbf16> to vector<13x256xbf16>
    %18 = vector.shape_cast %15 : vector<13x256xbf16> to vector<1x13x256xbf16>
    tpu.vector_store %arg7[%c0_12, %c0_13, %c0_14], %18 {strides = array<i32>} : memref<1x13x256xbf16, #tpu.memory_space<vmem>>, vector<1x13x256xbf16>,
    return
  }
  func.func @transform_0(%arg0: i32, %arg1: i32) -> (i32, i32, i32) {
    %c0_i32 = arith.constant 0 : i32
    %c0_i32_0 = arith.constant 0 : i32
    return %arg0, %c0_i32, %arg1 : i32, i32, i32
  }
  func.func @transform_1(%arg0: i32, %arg1: i32) -> (i32, i32) {
    %c0_i32 = arith.constant 0 : i32
    %c0_i32_0 = arith.constant 0 : i32
    %c0_i32_1 = arith.constant 0 : i32
    return %c0_i32, %c0_i32_0 : i32, i32
  }
  func.func @transform_2(%arg0: i32, %arg1: i32) -> (i32, i32) {
    %c0_i32 = arith.constant 0 : i32
    %c0_i32_0 = arith.constant 0 : i32
    %c0_i32_1 = arith.constant 0 : i32
    return %c0_i32, %c0_i32_0 : i32, i32
  }
  func.func @transform_3(%arg0: i32, %arg1: i32) -> (i32, i32) {
    %c0_i32 = arith.constant 0 : i32
    %c0_i32_0 = arith.constant 0 : i32
    %c0_i32_1 = arith.constant 0 : i32
    return %c0_i32, %c0_i32_0 : i32, i32
  }
  func.func @transform_4(%arg0: i32, %arg1: i32) -> (i32, i32) {
    %c0_i32 = arith.constant 0 : i32
    %c0_i32_0 = arith.constant 0 : i32
    %c0_i32_1 = arith.constant 0 : i32
    return %c0_i32, %c0_i32_0 : i32, i32
  }
  func.func @transform_5(%arg0: i32, %arg1: i32) -> (i32, i32, i32) {
    %c0_i32 = arith.constant 0 : i32
    %c0_i32_0 = arith.constant 0 : i32
    return %arg0, %c0_i32, %arg1 : i32, i32, i32
  }
}

</mosaic_0001>

<llo_original>
// kernel: tpu_custom_call.1
$region0: #{tpu_custom_call.1}
  #allocation0 [shape = 'u32[]', space=smem, size = 0x4, offset = 0x4, fixed_abs, tag = 'smem constant byte address 0x4 - core index']
  #allocation1 [shape = 'u32[144,128]{1,0:T(1,128)}', space=vmem, size = 0x12000, scoped, tag = 'internal scratch']
  %s0 = inlined_call_operand.vmem [shape: f32[2,4,256], index: 0, kind: input, shape index: {}]
  %s1 = inlined_call_operand.vmem [shape: bf16[32,4], index: 1, kind: input, shape index: {}]
  %s2 = inlined_call_operand.vmem [shape: f32[32,1], index: 2, kind: input, shape index: {}]
  %s3 = inlined_call_operand.vmem [shape: bf16[13,32], index: 3, kind: input, shape index: {}]
  %s4 = inlined_call_operand.vmem [shape: f32[13,1], index: 4, kind: input, shape index: {}]
  %s5 = inlined_call_operand.vmem [shape: bf16[2,13,256], index: 5, kind: output, shape index: {}]
  %s6 = sld [smem:[#allocation0]]
  $region53: #{tpu_custom_call.1} parent=0
    _
  %s8 = ssub.s32 1, %s6
  %s9 = scalar_select 0, %s8, %s6
  loop: start=0, step=1, limit=4
  $region2: #{tpu_custom_call.1} parent=0 // loop_pre_header
    _
  $region3: #{tpu_custom_call.1} parent=0 // loop_header
    %s11 = sphi 0, %s15
    %p12 = scmp.ge.s32.totalorder %s11, 4
    %s18 = sphi 0, %s30
    %s19 = sphi 0, %s26
    %s20 = sphi 0, %s18
    %s21 = sphi 0, %s19
    %s22 = sphi 0, %s20
    %s23 = sphi 0, %s21
    %s35 = sphi 0, %s37
    %s38 = sphi 0, %s35
    %s39 = sphi 0, %s38
    %s55 = sphi 0, %s39
    %s59 = sphi 0, %s59
    %s61 = sphi 0, %s59
    %s62 = sphi 0, %s61
    %s76 = sphi 0, %s62
    %s80 = sphi 0, %s80
    %s82 = sphi 0, %s80
    %s83 = sphi 0, %s82
    %s97 = sphi 0, %s83
    %s101 = sphi 0, %s101
    %s103 = sphi 0, %s101
    %s104 = sphi 0, %s103
    %s118 = sphi 0, %s104
    %s122 = sphi 0, %s122
    %s124 = sphi 0, %s122
    %s125 = sphi 0, %s124
    %s139 = sphi 0, %s125
    %s147 = sphi 0, %s149
    %s150 = sphi 0, %s147
    %s151 = sphi 0, %s150
    %s167 = sphi 0, %s151
  $region4: #{tpu_custom_call.1} parent=0 // loop_header_branch
    %14 = sbr.rel (%p12) target = $region8
  $region5: #{tpu_custom_call.1} parent=0 // loop_body
    %s16 = ssub.s32 %s11, 1
    %s17 = ssub.s32 %s11, 2
    %s24 = sadd.s32 1, %s19
    %p25 = scmp.ge.s32.totalorder %s24, 1
    %s26 = scalar_select %p25, 0, %s24
    %s27 = sadd.s32 1, %s18
    %s28 = scalar_select %p25, %s27, %s18
    %p29 = scmp.ge.s32.totalorder %s28, 2
    %s30 = scalar_select %p29, 0, %s28
    %s31 = ssub.s32 %s18, %s30
    %s32 = ssub.s32 %s19, %s26
    %s33 = sor.u32 %s31, %s32
    %p34 = scmp.eq.s32.totalorder %s33, 0
    %s36 = sadd.s32 %s35, 1
    %s37 = scalar_select %p34, %s35, %s36
    %p40 = pneg %p34
    %p41 = scmp.eq.s32.totalorder %s11, 1
    %p42 = por %p40, %p41
    %p43 = scmp.ne.s32.totalorder %s35, %s38
    %p44 = scmp.eq.s32.totalorder %s11, 0
    %p45 = por %p43, %p44
    %p46 = scmp.ne.s32.totalorder %s35, %s38
    %p47 = scmp.eq.s32.totalorder %s16, 1
    %p48 = por %p46, %p47
    %p49 = scmp.ne.s32.totalorder %s38, %s39
    %p50 = scmp.eq.s32.totalorder %s16, 0
    %p51 = por %p49, %p50
    %p52 = scmp.ne.s32.totalorder %s38, %s39
    %p53 = scmp.eq.s32.totalorder %s17, 1
    %p54 = por %p52, %p53
    %p56 = scmp.ne.s32.totalorder %s39, %s55
    %p57 = scmp.eq.s32.totalorder %s17, 0
    %p58 = por %p56, %p57
    %s60 = sadd.s32 %s59, 1
    %p63 = scmp.eq.s32.totalorder %s11, 1
    %p64 = scmp.ne.s32.totalorder %s59, %s61
    %p65 = scmp.eq.s32.totalorder %s11, 0
    %p66 = por %p64, %p65
    %p67 = scmp.ne.s32.totalorder %s59, %s61
    %p68 = scmp.eq.s32.totalorder %s16, 1
    %p69 = por %p67, %p68
    %p70 = scmp.ne.s32.totalorder %s61, %s62
    %p71 = scmp.eq.s32.totalorder %s16, 0
    %p72 = por %p70, %p71
    %p73 = scmp.ne.s32.totalorder %s61, %s62
    %p74 = scmp.eq.s32.totalorder %s17, 1
    %p75 = por %p73, %p74
    %p77 = scmp.ne.s32.totalorder %s62, %s76
    %p78 = scmp.eq.s32.totalorder %s17, 0
    %p79 = por %p77, %p78
    %s81 = sadd.s32 %s80, 1
    %p84 = scmp.eq.s32.totalorder %s11, 1
    %p85 = scmp.ne.s32.totalorder %s80, %s82
    %p86 = scmp.eq.s32.totalorder %s11, 0
    %p87 = por %p85, %p86
    %p88 = scmp.ne.s32.totalorder %s80, %s82
    %p89 = scmp.eq.s32.totalorder %s16, 1
    %p90 = por %p88, %p89
    %p91 = scmp.ne.s32.totalorder %s82, %s83
    %p92 = scmp.eq.s32.totalorder %s16, 0
    %p93 = por %p91, %p92
    %p94 = scmp.ne.s32.totalorder %s82, %s83
    %p95 = scmp.eq.s32.totalorder %s17, 1
    %p96 = por %p94, %p95
    %p98 = scmp.ne.s32.totalorder %s83, %s97
    %p99 = scmp.eq.s32.totalorder %s17, 0
    %p100 = por %p98, %p99
    %s102 = sadd.s32 %s101, 1
    %p105 = scmp.eq.s32.totalorder %s11, 1
    %p106 = scmp.ne.s32.totalorder %s101, %s103
    %p107 = scmp.eq.s32.totalorder %s11, 0
    %p108 = por %p106, %p107
    %p109 = scmp.ne.s32.totalorder %s101, %s103
    %p110 = scmp.eq.s32.totalorder %s16, 1
    %p111 = por %p109, %p110
    %p112 = scmp.ne.s32.totalorder %s103, %s104
    %p113 = scmp.eq.s32.totalorder %s16, 0
    %p114 = por %p112, %p113
    %p115 = scmp.ne.s32.totalorder %s103, %s104
    %p116 = scmp.eq.s32.totalorder %s17, 1
    %p117 = por %p115, %p116
    %p119 = scmp.ne.s32.totalorder %s104, %s118
    %p120 = scmp.eq.s32.totalorder %s17, 0
    %p121 = por %p119, %p120
    %s123 = sadd.s32 %s122, 1
    %p126 = scmp.eq.s32.totalorder %s11, 1
    %p127 = scmp.ne.s32.totalorder %s122, %s124
    %p128 = scmp.eq.s32.totalorder %s11, 0
    %p129 = por %p127, %p128
    %p130 = scmp.ne.s32.totalorder %s122, %s124
    %p131 = scmp.eq.s32.totalorder %s16, 1
    %p132 = por %p130, %p131
    %p133 = scmp.ne.s32.totalorder %s124, %s125
    %p134 = scmp.eq.s32.totalorder %s16, 0
    %p135 = por %p133, %p134
    %p136 = scmp.ne.s32.totalorder %s124, %s125
    %p137 = scmp.eq.s32.totalorder %s17, 1
    %p138 = por %p136, %p137
    %p140 = scmp.ne.s32.totalorder %s125, %s139
    %p141 = scmp.eq.s32.totalorder %s17, 0
    %p142 = por %p140, %p141
    %s143 = ssub.s32 %s18, %s30
    %s144 = ssub.s32 %s19, %s26
    %s145 = sor.u32 %s143, %s144
    %p146 = scmp.eq.s32.totalorder %s145, 0
    %s148 = sadd.s32 %s147, 1
    %s149 = scalar_select %p146, %s147, %s148
    %p152 = pneg %p146
    %p153 = scmp.eq.s32.totalorder %s11, 1
    %p154 = por %p152, %p153
    %p155 = scmp.ne.s32.totalorder %s147, %s150
    %p156 = scmp.eq.s32.totalorder %s11, 0
    %p157 = por %p155, %p156
    %p158 = scmp.ne.s32.totalorder %s147, %s150
    %p159 = scmp.eq.s32.totalorder %s16, 1
    %p160 = por %p158, %p159
    %p161 = scmp.ne.s32.totalorder %s150, %s151
    %p162 = scmp.eq.s32.totalorder %s16, 0
    %p163 = por %p161, %p162
    %p164 = scmp.ne.s32.totalorder %s150, %s151
    %p165 = scmp.eq.s32.totalorder %s17, 1
    %p166 = por %p164, %p165
    %p168 = scmp.ne.s32.totalorder %s151, %s167
    %p169 = scmp.eq.s32.totalorder %s17, 0
    %p170 = por %p168, %p169
    %p171 = scmp.le.s32.totalorder 1, %s11
    %p172 = scmp.lt.s32.totalorder %s11, 3
    %p173 = pnand %p171, %p172
    %p174 = pneg %p173
    // Predicated region
    $region9: #{tpu_custom_call.1} parent=5 // pred_check
      _
    $region10: #{tpu_custom_call.1} parent=5 // pred_check_branch
      %176 = sbr.rel (%p173) target = $region12
    $region11: #{tpu_custom_call.1} parent=5 // pred_region
      %s177 = ssub.s32 %s11, 1
      // Predicated region
      $region13: #{tpu_custom_call.1} parent=11 // pred_check
        %p178 = pneg %p72
      $region14: #{tpu_custom_call.1} parent=11 // pred_check_branch
        %180 = sbr.rel (%p178) target = $region16
      $region15: #{tpu_custom_call.1} parent=11 // pred_region
        _
      $region16: #{tpu_custom_call.1} parent=11 // pred_fallthru
        _
      // Predicated region
      $region17: #{tpu_custom_call.1} parent=11 // pred_check
        %p181 = pneg %p93
      $region18: #{tpu_custom_call.1} parent=11 // pred_check_branch
        %183 = sbr.rel (%p181) target = $region20
      $region19: #{tpu_custom_call.1} parent=11 // pred_region
        _
      $region20: #{tpu_custom_call.1} parent=11 // pred_fallthru
        _
      // Predicated region
      $region21: #{tpu_custom_call.1} parent=11 // pred_check
        %p184 = pneg %p114
      $region22: #{tpu_custom_call.1} parent=11 // pred_check_branch
        %186 = sbr.rel (%p184) target = $region24
      $region23: #{tpu_custom_call.1} parent=11 // pred_region
        _
      $region24: #{tpu_custom_call.1} parent=11 // pred_fallthru
        _
      // Predicated region
      $region25: #{tpu_custom_call.1} parent=11 // pred_check
        %p187 = pneg %p135
      $region26: #{tpu_custom_call.1} parent=11 // pred_check_branch
        %189 = sbr.rel (%p187) target = $region28
      $region27: #{tpu_custom_call.1} parent=11 // pred_region
        _
      $region28: #{tpu_custom_call.1} parent=11 // pred_fallthru
        _
    $region12: #{tpu_custom_call.1} parent=5 // pred_fallthru
      _
    %p190 = scmp.lt.s32.totalorder %s11, 2
    // Predicated region
    $region29: #{tpu_custom_call.1} parent=5 // pred_check
      %p191 = pneg %p190
    $region30: #{tpu_custom_call.1} parent=5 // pred_check_branch
      %193 = sbr.rel (%p191) target = $region32
    $region31: #{tpu_custom_call.1} parent=5 // pred_region
      // Predicated region
      $region33: #{tpu_custom_call.1} parent=31 // pred_check
        %p194 = pneg %p45
      $region34: #{tpu_custom_call.1} parent=31 // pred_check_branch
        %196 = sbr.rel (%p194) target = $region36
      $region35: #{tpu_custom_call.1} parent=31 // pred_region
        %s197 = smul.u32 2, %s19
        %p198 = scmp.lt.s32.totalorder %s18, 1
        %s199 = scalar_select %p198, %s18, 1
        %p200 = scmp.lt.s32.totalorder %s197, 1
        %s201 = scalar_select %p200, %s197, 1
        %s202 = smul.addr %s199, 2
        %s203 = sadd.s32 %s201, %s202
        %s204 = smul.addr %s203, 4
        %s205 = scalar_lea.vmem %s0, %s204
        %s206 = smul.u32 2, %s19
      $region36: #{tpu_custom_call.1} parent=31 // pred_fallthru
        _
    $region32: #{tpu_custom_call.1} parent=5 // pred_fallthru
      _
    %p207 = scmp.le.s32.totalorder 1, %s11
    %p208 = scmp.lt.s32.totalorder %s11, 3
    %p209 = pnand %p207, %p208
    %p210 = pneg %p209
    // Predicated region
    $region37: #{tpu_custom_call.1} parent=5 // pred_check
      _
    $region38: #{tpu_custom_call.1} parent=5 // pred_check_branch
      %212 = sbr.rel (%p209) target = $region40
    $region39: #{tpu_custom_call.1} parent=5 // pred_region
      %s213 = ssub.s32 %s11, 1
      %s214 = smul.u32 2, %s21
      %p215 = scmp.lt.s32.totalorder %s20, 1
      %s216 = scalar_select %p215, %s20, 1
      %p217 = scmp.lt.s32.totalorder %s214, 1
      %s218 = scalar_select %p217, %s214, 1
      %s219 = smul.addr %s216, 2
      %s220 = sadd.s32 %s218, %s219
      %s221 = smul.addr %s220, 4
      %s222 = scalar_lea.vmem %s0, %s221
      %p223 = pneg %p51
      %p224 = pneg %p48
      %p225 = pneg %p72
      %p226 = pneg %p69
      %p227 = pneg %p93
      %p228 = pneg %p90
      %p229 = pneg %p114
      %p230 = pneg %p111
      %p231 = pneg %p135
      %p232 = pneg %p132
      %p233 = pneg %p163
      %p234 = pneg %p160
      %s235 = smul.u32 2, %s21
      %p236 = scmp.lt.s32.totalorder %s20, 1
      %s237 = scalar_select %p236, %s20, 1
      %p238 = scmp.lt.s32.totalorder %s235, 1
      %s239 = scalar_select %p238, %s235, 1
      %s240 = smul.addr %s237, 4
      %s241 = sadd.s32 %s239, %s240
      %s242 = smul.addr %s241, 4
      %s243 = scalar_lea.vmem %s5, %s242
      %s244 = smul.u32 2, %s21
      %p245 = scmp.lt.s32.totalorder %s20, 1
      %s246 = scalar_select %p245, %s20, 1
      %p247 = scmp.lt.s32.totalorder %s244, 1
      %s248 = scalar_select %p247, %s244, 1
      %s249 = smul.addr %s246, 2
      %s250 = sadd.s32 %s248, %s249
      %s251 = smul.addr %s250, 4
      %s252 = scalar_lea.vmem %s0, %s251
      %s253 = smul.u32 2, %s21
      %s254 = smul.u32 2, %s21
      %p255 = scmp.lt.s32.totalorder %s20, 1
      %s256 = scalar_select %p255, %s20, 1
      %p257 = scmp.lt.s32.totalorder %s254, 1
      %s258 = scalar_select %p257, %s254, 1
      %s259 = smul.addr %s256, 4
      %s260 = sadd.s32 %s258, %s259
      %s261 = smul.addr %s260, 4
      %s262 = scalar_lea.vmem %s5, %s261
      %s263 = smul.u32 2, %s21
      %v265 = vld [vmem:[%s252] sm:$0xff]
      %v266 = vld [vmem:[%s1] sm:$0xf]
      %v267 = vld [vmem:[%s1 + $0x4] sm:$0xf]
      %v268 = vld [vmem:[%s1 + $0x8] sm:$0xf]
      %v269 = vld [vmem:[%s1 + $0xc] sm:$0xf]
      %v270 = vld [vmem:[%s2] sm:$0xff]
      %v271 = vld [vmem:[%s2 + $0x8] sm:$0xff]
      %v272 = vld [vmem:[%s2 + $0x10] sm:$0xff]
      %v273 = vld [vmem:[%s2 + $0x18] sm:$0xff]
      %275 = vset.pattern.permute.xlu0 0
      %276 = vperm.xlu0 %275, %v270
      %v277 = vpop.permute.xlu0 %276
      %280 = vset.pattern.permute.xlu0 0
      %281 = vperm.xlu0 %280, %v271
      %v282 = vpop.permute.xlu0 %281
      %285 = vset.pattern.permute.xlu0 0
      %286 = vperm.xlu0 %285, %v272
      %v287 = vpop.permute.xlu0 %286
      %290 = vset.pattern.permute.xlu0 0
      %291 = vperm.xlu0 %290, %v273
      %v292 = vpop.permute.xlu0 %291
      %v298 = vunpack.c.l.b16 %v266
      %v299 = vunpack.c.l.b16 %v267
      %v300 = vunpack.c.l.b16 %v268
      %v301 = vunpack.c.l.b16 %v269
      %v302 = vpack.c.b16 %v299, %v298
      %v303 = vpack.c.b16 %v301, %v300
      %v305 = vcombine.high %v265, %v265
      %vm306 = vcmask 31744
      %v308 = vsel %vm306, %v302, 0
      %v311 = vsel %vm306, %v303, 0
      %vm313 = vcmask 1043456
      %v314 = vsel %vm313, %v265, 0
      %v316 = vsel %vm313, %v305, 0
      %318 = vmatprep.subr.mxu0 %v316
      %319 = vmatpush1.msra.mxu0 %v314
      %320 = vmatprep.subr.mxu0 0.0
      %321 = vmatpush1.msra.mxu0 0.0
      %322 = vmatprep.subr.mxu0 0.0
      %323 = vmatpush1.msra.mxu0 0.0
      %324 = vmatprep.subr.mxu0 0.0
      %325 = vmatpush1.msra.mxu0 0.0
      %326 = vmatprep.subr.mxu0 0.0
      %327 = vmatpush1.msra.mxu0 0.0
      %328 = vmatprep.subr.mxu0 0.0
      %329 = vmatpush1.msra.mxu0 0.0
      %330 = vmatprep.subr.mxu0 0.0
      %331 = vmatpush1.msra.mxu0 0.0
      %332 = vmatprep.subr.mxu0 0.0
      %333 = vmatpush1.msra.mxu0 0.0
      %334 = vmatprep.subr.mxu0 0.0
      %335 = vmatpush1.msra.mxu0 0.0
      %336 = vmatprep.subr.mxu0 0.0
      %337 = vmatpush1.msra.mxu0 0.0
      %338 = vmatprep.subr.mxu0 0.0
      %339 = vmatpush1.msra.mxu0 0.0
      %340 = vmatprep.subr.mxu0 0.0
      %341 = vmatpush1.msra.mxu0 0.0
      %342 = vmatprep.subr.mxu0 0.0
      %343 = vmatpush1.msra.mxu0 0.0
      %344 = vmatprep.subr.mxu0 0.0
      %345 = vmatpush1.msra.mxu0 0.0
      %346 = vmatprep.subr.mxu0 0.0
      %347 = vmatpush1.msra.mxu0 0.0
      %348 = vmatprep.subr.mxu0 0.0
      %349 = vmatpush1.msra.mxu0 0.0
      %350 = vmatprep.subr.mxu0 0.0
      %351 = vmatpush1.msra.mxu0 0.0
      %352 = vmatprep.subr.mxu0 0.0
      %353 = vmatpush1.msra.mxu0 0.0
      %354 = vmatprep.subr.mxu0 0.0
      %355 = vmatpush1.msra.mxu0 0.0
      %356 = vmatprep.subr.mxu0 0.0
      %357 = vmatpush1.msra.mxu0 0.0
      %358 = vmatprep.subr.mxu0 0.0
      %359 = vmatpush1.msra.mxu0 0.0
      %360 = vmatprep.subr.mxu0 0.0
      %361 = vmatpush1.msra.mxu0 0.0
      %362 = vmatprep.subr.mxu0 0.0
      %363 = vmatpush1.msra.mxu0 0.0
      %364 = vmatprep.subr.mxu0 0.0
      %365 = vmatpush1.msra.mxu0 0.0
      %366 = vmatprep.subr.mxu0 0.0
      %367 = vmatpush1.msra.mxu0 0.0
      %368 = vmatprep.subr.mxu0 0.0
      %369 = vmatpush1.msra.mxu0 0.0
      %370 = vmatprep.subr.mxu0 0.0
      %371 = vmatpush1.msra.mxu0 0.0
      %372 = vmatprep.subr.mxu0 0.0
      %373 = vmatpush1.msra.mxu0 0.0
      %374 = vmatprep.subr.mxu0 0.0
      %375 = vmatpush1.msra.mxu0 0.0
      %376 = vmatprep.subr.mxu0 0.0
      %377 = vmatpush1.msra.mxu0 0.0
      %378 = vmatprep.subr.mxu0 0.0
      %379 = vmatpush1.msra.mxu0 0.0
      %380 = vmatprep.subr.mxu0 0.0
      %381 = vmatpush1.msra.mxu0 0.0
      %382 = vmatprep.mubr.bf16.mxu0 0
      %383 = vmatmul.mubr.bf16.gmra.mrb[0].mxu0 %v308
      %v384 = vpop.f32.mrb[0].mxu0
      %v385 = vadd.f32 %v277, %v384
      %v386 = vpop.f32.mrb[0].mxu0
      %v387 = vadd.f32 %v277, %v386
      %v388 = vpop.f32.mrb[0].mxu0
      %v389 = vadd.f32 %v282, %v388
      %v390 = vpop.f32.mrb[0].mxu0
      %v391 = vadd.f32 %v282, %v390
      %392 = vmatprep.mubr.bf16.mxu0 0
      %393 = vmatmul.mubr.bf16.gmra.mrb[0].mxu0 %v311
      %v394 = vpop.f32.mrb[0].mxu0
      %v395 = vadd.f32 %v287, %v394
      %v396 = vpop.f32.mrb[0].mxu0
      %v397 = vadd.f32 %v287, %v396
      %v398 = vpop.f32.mrb[0].mxu0
      %v399 = vadd.f32 %v292, %v398
      %v400 = vpop.f32.mrb[0].mxu0
      %v401 = vadd.f32 %v292, %v400
      %402 = vdwg.mxu0
      %v403 = vmax.f32 %v385, 0.0
      %v404 = vmax.f32 %v387, 0.0
      %v405 = vmax.f32 %v389, 0.0
      %v406 = vmax.f32 %v391, 0.0
      %v407 = vmax.f32 %v395, 0.0
      %v408 = vmax.f32 %v397, 0.0
      %v409 = vmax.f32 %v399, 0.0
      %v410 = vmax.f32 %v401, 0.0
      %v411 = vpack.c.bf16 %v405, %v403
      %v412 = vpack.c.bf16 %v406, %v404
      %v413 = vpack.c.bf16 %v409, %v407
      %v414 = vpack.c.bf16 %v410, %v408
      %v415 = vld [vmem:[%s3] sm:$0xf]
      %v416 = vld [vmem:[%s3 + $0x4] sm:$0x7]
      %v417 = vld [vmem:[%s4] sm:$0xff]
      %v418 = vld [vmem:[%s4 + $0x8] sm:$0x1f]
      %420 = vset.pattern.permute.xlu0 0
      %421 = vperm.xlu0 %420, %v417
      %v422 = vpop.permute.xlu0 %421
      %425 = vset.pattern.permute.xlu0 0
      %426 = vperm.xlu0 %425, %v418
      %v427 = vpop.permute.xlu0 %426
      %v431 = vunpack.c.l.b16 %v415
      %v432 = vunpack.c.l.b16 %v416
      %v433 = vpack.c.b16 %v432, %v431
      %vm434 = vcmask 261120
      %v436 = vsel %vm434, %v433, 0
      %438 = vmatprep.subr.bf16.mxu0 %v412
      %439 = vmatpush1.bf16.msra.mxu0 %v411
      %440 = vmatprep.subr.bf16.mxu0 %v414
      %441 = vmatpush1.bf16.msra.mxu0 %v413
      %442 = vmatprep.subr.bf16.mxu0 0
      %443 = vmatpush1.bf16.msra.mxu0 0
      %444 = vmatprep.subr.bf16.mxu0 0
      %445 = vmatpush1.bf16.msra.mxu0 0
      %446 = vmatprep.subr.bf16.mxu0 0
      %447 = vmatpush1.bf16.msra.mxu0 0
      %448 = vmatprep.subr.bf16.mxu0 0
      %449 = vmatpush1.bf16.msra.mxu0 0
      %450 = vmatprep.subr.bf16.mxu0 0
      %451 = vmatpush1.bf16.msra.mxu0 0
      %452 = vmatprep.subr.bf16.mxu0 0
      %453 = vmatpush1.bf16.msra.mxu0 0
      %454 = vmatprep.subr.bf16.mxu0 0
      %455 = vmatpush1.bf16.msra.mxu0 0
      %456 = vmatprep.subr.bf16.mxu0 0
      %457 = vmatpush1.bf16.msra.mxu0 0
      %458 = vmatprep.subr.bf16.mxu0 0
      %459 = vmatpush1.bf16.msra.mxu0 0
      %460 = vmatprep.subr.bf16.mxu0 0
      %461 = vmatpush1.bf16.msra.mxu0 0
      %462 = vmatprep.subr.bf16.mxu0 0
      %463 = vmatpush1.bf16.msra.mxu0 0
      %464 = vmatprep.subr.bf16.mxu0 0
      %465 = vmatpush1.bf16.msra.mxu0 0
      %466 = vmatprep.subr.bf16.mxu0 0
      %467 = vmatpush1.bf16.msra.mxu0 0
      %468 = vmatprep.subr.bf16.mxu0 0
      %469 = vmatpush1.bf16.msra.mxu0 0
      %470 = vmatprep.mubr.bf16.mxu0 0
      %471 = vmatmul.mubr.bf16.gmra.mrb[0].mxu0 %v436
      %v472 = vpop.f32.mrb[0].mxu0
      %v473 = vadd.f32 %v422, %v472
      %v474 = vpop.f32.mrb[0].mxu0
      %v475 = vadd.f32 %v422, %v474
      %v476 = vpop.f32.mrb[0].mxu0
      %v477 = vadd.f32 %v427, %v476
      %v478 = vpop.f32.mrb[0].mxu0
      %v479 = vadd.f32 %v427, %v478
      %480 = vdwg.mxu0
      %v481 = vpack.c.bf16 %v477, %v473
      %v482 = vpack.c.bf16 %v479, %v475
      %v485 = vunpack.c.l.b16 %v481
      %v486 = vunpack.c.l.b16 %v482
      %v487 = vunpack.c.h.b16 %v481
      %v488 = vunpack.c.h.b16 %v482
      %v489 = vpack.c.b16 %v486, %v485
      %v490 = vpack.c.b16 %v488, %v487
      %493 = vst [vmem:[%s262] sm:$0xff] %v489
      %vm494 = vcmask 1042432
      %vm495 = vsmask.f32 2304
      %vm496 = vmand %vm494, %vm495
      %vm497 = vcmask 1046532
      %vm498 = vsmask.f32 6400
      %vm499 = vmand %vm497, %vm498
      %vm500 = vmor %vm499, %vm496
      %v501 = vld [vmem:[%s262 + $0x8] sm:$0x77]
      %v502 = vsel %vm500, %v490, %v501
      %503 = vst [vmem:[%s262 + $0x8] sm:$0x77] %v502
      %s504 = smul.u32 2, %s21
      %p505 = scmp.lt.s32.totalorder %s20, 1
      %s506 = scalar_select %p505, %s20, 1
      %p507 = scmp.lt.s32.totalorder %s504, 1
      %s508 = scalar_select %p507, %s504, 1
      %s509 = smul.addr %s506, 4
      %s510 = sadd.s32 %s508, %s509
      %s511 = smul.addr %s510, 4
      %s512 = scalar_lea.vmem %s5, %s511
      // Predicated region
      $region41: #{tpu_custom_call.1} parent=39 // pred_check
        %p513 = pneg %p160
      $region42: #{tpu_custom_call.1} parent=39 // pred_check_branch
        %515 = sbr.rel (%p513) target = $region44
      $region43: #{tpu_custom_call.1} parent=39 // pred_region
        %s516 = smul.u32 2, %s21
      $region44: #{tpu_custom_call.1} parent=39 // pred_fallthru
        _
    $region40: #{tpu_custom_call.1} parent=5 // pred_fallthru
      _
    %p517 = scmp.le.s32.totalorder 2, %s11
    // Predicated region
    $region45: #{tpu_custom_call.1} parent=5 // pred_check
      %p518 = pneg %p517
    $region46: #{tpu_custom_call.1} parent=5 // pred_check_branch
      %520 = sbr.rel (%p518) target = $region48
    $region47: #{tpu_custom_call.1} parent=5 // pred_region
      %s521 = ssub.s32 %s11, 2
      // Predicated region
      $region49: #{tpu_custom_call.1} parent=47 // pred_check
        %p522 = pneg %p166
      $region50: #{tpu_custom_call.1} parent=47 // pred_check_branch
        %524 = sbr.rel (%p522) target = $region52
      $region51: #{tpu_custom_call.1} parent=47 // pred_region
        %s525 = smul.u32 2, %s23
        %p526 = scmp.lt.s32.totalorder %s22, 1
        %s527 = scalar_select %p526, %s22, 1
        %p528 = scmp.lt.s32.totalorder %s525, 1
        %s529 = scalar_select %p528, %s525, 1
        %s530 = smul.addr %s527, 4
        %s531 = sadd.s32 %s529, %s530
        %s532 = smul.addr %s531, 4
        %s533 = scalar_lea.vmem %s5, %s532
      $region52: #{tpu_custom_call.1} parent=47 // pred_fallthru
        _
    $region48: #{tpu_custom_call.1} parent=5 // pred_fallthru
      _
  $region6: #{tpu_custom_call.1} parent=0 // loop_footer
    %s15 = sadd.s32 1, %s11
  $region7: #{tpu_custom_call.1} parent=0 // loop_footer_branch
    %10 = sbr.rel target = $region3
  $region8: #{tpu_custom_call.1} parent=0 // loop_exit
    _

</llo_original>
